<compile_context>
chip_gen: v6e
topology: v6e:2x2x1
jax: 0.10.0
libtpu: 0.0.40
codegen_flags: <defaults>
</compile_context>

<pallas_src>
import math
import numpy as np
import jax
import jax.numpy as jnp
from jax import lax
from jax.experimental import pallas as pl
from jax.experimental.pallas import tpu as pltpu


def _round_up(x, m):
    return ((int(x) + m - 1) // m) * m


# ----------------------------------------------------------------------------
# Kernel 1: edge geometry (node-blocked signed-one-hot gather on MXU)
# ----------------------------------------------------------------------------
def _edge_geometry_kernel(tile_group_ref, edge_ref, poshi_ref, poslo_ref, out_ref):
    # tile_group_ref: (num_tiles,) int32 SMEM  (consumed by the index_maps)
    # edge_ref      : (2, TE) int32   row 0 = j (source), row 1 = i (target),
    #                                 ids are LOCAL to this tile's node block,
    #                                 padded slots are j=i=0 -> dvec=dist=0
    # poshi/poslo   : (8, NB) bf16    rows 0-2 = x/y/z (hi / lo split), rest 0
    # out_ref       : (8, TE) f32     rows 0-2 = dvec, row 3 = dist, rest 0
    del tile_group_ref
    NB = poshi_ref.shape[1]
    TE = edge_ref.shape[1]

    edges = edge_ref[...]
    j = edges[0:1, :]                                     # (1, TE)
    i = edges[1:2, :]                                     # (1, TE)

    node_iota = lax.broadcasted_iota(jnp.int32, (NB, TE), 0)
    # bf16 signed one-hot (0 / +-1 are exact in bf16)
    sel = ((node_iota == j).astype(jnp.bfloat16)
           - (node_iota == i).astype(jnp.bfloat16))       # (NB, TE)

    # pos[j] - pos[i] fused into two bf16 MXU matmuls (hi + lo ~= f32 exact)
    dvec = (jnp.dot(poshi_ref[...], sel, preferred_element_type=jnp.float32)
            + jnp.dot(poslo_ref[...], sel, preferred_element_type=jnp.float32))

    dx = dvec[0:1, :]
    dy = dvec[1:2, :]
    dz = dvec[2:3, :]
    dist = jnp.sqrt(dx * dx + dy * dy + dz * dz)          # (1, TE), VPU only

    out_ref[...] = dvec                                   # full lane-dense store
    out_ref[3:4, :] = dist                                # single-row overwrite


def generate_graph(pos, edge_index, batch, num_graphs):
    """Non-PBC branch of BaseModel.generate_graph (edge_index given; OTF radius
    graph construction and edge bucketing are host glue outside the kernel)."""
    pos = jnp.asarray(pos, jnp.float32)
    edge_np = np.asarray(edge_index).astype(np.int64)
    batch_np = np.asarray(batch).astype(np.int64)
    N = int(pos.shape[0])
    E = int(edge_np.shape[1])

    if E == 0:
        return (edge_index, jnp.zeros((0,), jnp.float32), jnp.zeros((0, 3), jnp.float32),
                jnp.zeros((0, 3), jnp.float32), jnp.zeros((0, 3), jnp.float32),
                jnp.zeros((num_graphs,), jnp.int32))

    natoms = np.bincount(batch_np, minlength=num_graphs).astype(np.int64)
    node_start = np.cumsum(natoms) - natoms

    # --- host glue: pack consecutive graphs into NB-atom node blocks ---------
    NB = max(128, _round_up(max(int(natoms.max()), 1), 128))
    group_of = np.zeros(num_graphs, np.int64)
    packed_base = np.zeros(num_graphs, np.int64)
    g = used = 0
    for b in range(num_graphs):
        na = int(natoms[b])
        if used + na > NB:
            g += 1
            used = 0
        group_of[b] = g
        packed_base[b] = g * NB + used
        used += na
    num_groups = g + 1

    packed_id = packed_base[batch_np] + (np.arange(N) - node_start[batch_np])

    # Positions packed per group, split bf16 hi/lo (hi + lo reconstructs ~f32).
    pos_hi = pos.astype(jnp.bfloat16)
    pos_lo = (pos - pos_hi.astype(jnp.float32)).astype(jnp.bfloat16)
    NPK = num_groups * NB
    pid = jnp.asarray(packed_id, jnp.int32)
    poshi8 = jnp.zeros((8, NPK), jnp.bfloat16).at[:3, pid].set(pos_hi.T)
    poslo8 = jnp.zeros((8, NPK), jnp.bfloat16).at[:3, pid].set(pos_lo.T)

    # --- bucket edges by node block; pad each bucket to a multiple of TE -----
    j_np, i_np = edge_np[0], edge_np[1]
    edge_group = group_of[batch_np[j_np]]                 # radius_graph edges stay in-graph
    counts = np.bincount(edge_group, minlength=num_groups).astype(np.int64)
    TE = int(min(2048, max(128, _round_up(max(int(counts.max()), 1), 128))))
    padded_counts = ((counts + TE - 1) // TE) * TE
    group_edge_base = np.cumsum(padded_counts) - padded_counts
    E_total = int(padded_counts.sum())
    num_tiles = E_total // TE

    order = np.argsort(edge_group, kind="stable")
    seg_start = np.cumsum(counts) - counts
    eg_sorted = edge_group[order]
    slot_sorted = group_edge_base[eg_sorted] + (np.arange(E) - seg_start[eg_sorted])
    slot = np.empty(E, np.int64)
    slot[order] = slot_sorted                              # kernel column of each edge

    j_local = packed_id[j_np] - edge_group * NB
    i_local = packed_id[i_np] - edge_group * NB
    edges_local = np.zeros((2, E_total), np.int32)         # padding: j=i=0 -> zero column
    edges_local[0, slot] = j_local
    edges_local[1, slot] = i_local
    tile_group = np.repeat(np.arange(num_groups, dtype=np.int32),
                           (padded_counts // TE).astype(np.int64))

    out = pl.pallas_call(
        _edge_geometry_kernel,
        out_shape=jax.ShapeDtypeStruct((8, E_total), jnp.float32),
        grid_spec=pltpu.PrefetchScalarGridSpec(
            num_scalar_prefetch=1,
            grid=(num_tiles,),
            in_specs=[
                pl.BlockSpec((2, TE), lambda e, tg: (0, e)),       # edge tile
                pl.BlockSpec((8, NB), lambda e, tg: (0, tg[e])),   # pos hi block
                pl.BlockSpec((8, NB), lambda e, tg: (0, tg[e])),   # pos lo block
            ],
            out_specs=pl.BlockSpec((8, TE), lambda e, tg: (0, e)),
        ),
        compiler_params=pltpu.CompilerParams(
            dimension_semantics=("parallel",),             # megacore on v7x
            vmem_limit_bytes=32 * 1024 * 1024,
        ),
    )(jnp.asarray(tile_group), jnp.asarray(edges_local), poshi8, poslo8)

    slot_j = jnp.asarray(slot, jnp.int32)
    distance_vec = out[:3, slot_j].T                       # back to original edge order
    edge_dist = out[3, slot_j]
    cell_offsets = jnp.zeros((E, 3), jnp.float32)
    cell_offset_distances = jnp.zeros((E, 3), jnp.float32)

    # compute_neighbors: edges per graph, counted on the target atom's graph id.
    tgt_graph = jnp.asarray(batch)[jnp.asarray(edge_index)[1]]
    neighbors = jax.ops.segment_sum(
        jnp.ones((E,), jnp.int32), tgt_graph, num_segments=num_graphs
    ).astype(jnp.int32)

    return (edge_index, edge_dist, distance_vec, cell_offsets,
            cell_offset_distances, neighbors)


# ----------------------------------------------------------------------------
# Kernel 2: per-graph normalized Laplacian  L = I - N A N   (N = diag(deg^-1/2))
# ----------------------------------------------------------------------------
def _normalized_laplacian_kernel(edges_ref, L_ref):
    # edges_ref: (Gt, 2, Emax) int32, local (src, dst) per graph, -1 padded
    # L_ref    : (n, Gt*n)     float32, graph g occupies lanes [g*n, (g+1)*n)
    Gt = edges_ref.shape[0]
    Emax = edges_ref.shape[2]
    n = L_ref.shape[0]

    iota_ne = lax.broadcasted_iota(jnp.int32, (n, Emax), 0)
    eye = (lax.broadcasted_iota(jnp.int32, (n, n), 0)
           == lax.broadcasted_iota(jnp.int32, (n, n), 1)).astype(jnp.float32)

    # TODO(synk): per-graph edge counts could bound this contraction (skip
    # all-padded Emax chunks via scalar prefetch); not implemented.
    @pl.loop(0, Gt)
    def _(g):
        eg = edges_ref[g]                                 # (2, Emax)
        src = eg[0:1, :]
        dst = eg[1:2, :]

        # bf16 one-hots (exact for 0/1); padded (-1) edges give all-zero columns.
        oh_src = (iota_ne == src).astype(jnp.bfloat16)    # (n, Emax)
        oh_dst = (iota_ne == dst).astype(jnp.bfloat16)

        # dense adjacency A[s, d] = #edges (s -> d), contracting the edge axis.
        A = lax.dot_general(oh_src, oh_dst, (((1,), (1,)), ((), ())),
                            preferred_element_type=jnp.float32)          # (n, n)

        deg = jnp.sum(A, axis=1, keepdims=True)                          # (n, 1) out-degree
        ninv_c = lax.rsqrt(jnp.maximum(deg, 1.0))                        # deg.clip(1)**-0.5
        # Lane-oriented copy of ninv_c via a tiny eye-contraction (avoids
        # re-streaming the (n, Emax) panel and avoids a cross-layout transpose).
        ninv_r = lax.dot_general(ninv_c, eye, (((0,), (0,)), ((), ())),
                                 preferred_element_type=jnp.float32)     # (1, n)

        off = pl.multiple_of(g * n, n)
        L_ref[:, pl.ds(off, n)] = eye - A * ninv_c * ninv_r


def group_edges_per_graph(batch_np, edge_index_np, natoms_np):
    """Host glue (vectorized numpy, run once per batch): group edges by graph,
    shift to local ids, pad to a lane-aligned Emax with -1."""
    batch_np = np.asarray(batch_np)
    natoms_np = np.asarray(natoms_np)
    B = len(natoms_np)
    offsets = np.cumsum(natoms_np) - natoms_np

    src = np.asarray(edge_index_np[0])
    dst = np.asarray(edge_index_np[1])
    keep = batch_np[src] == batch_np[dst]
    src, dst = src[keep], dst[keep]
    g_e = batch_np[src]

    counts = np.bincount(g_e, minlength=B)
    Emax = _round_up(max(int(counts.max()) if counts.size else 1, 1), 128)

    order = np.argsort(g_e, kind="stable")
    src_s, dst_s, g_s = src[order], dst[order], g_e[order]
    starts = np.cumsum(counts) - counts
    pos_in_graph = np.arange(len(g_s)) - starts[g_s]

    edges_padded = -np.ones((B, 2, Emax), np.int32)
    edges_padded[g_s, 0, pos_in_graph] = src_s - offsets[g_s]
    edges_padded[g_s, 1, pos_in_graph] = dst_s - offsets[g_s]
    return jnp.asarray(edges_padded), offsets


def build_normalized_laplacian(edges_padded, n):
    B = int(edges_padded.shape[0])
    Emax = int(edges_padded.shape[2])
    # Smallest graphs-per-step that makes the output slab a 128-lane multiple.
    Gt = max(1, 128 // math.gcd(n, 128))
    B_pad = _round_up(B, Gt)
    if B_pad != B:
        pad = -jnp.ones((B_pad - B, 2, Emax), jnp.int32)   # empty graphs -> L = I
        edges_padded = jnp.concatenate([edges_padded, pad], axis=0)

    L_flat = pl.pallas_call(
        _normalized_laplacian_kernel,
        grid=(B_pad // Gt,),
        in_specs=[pl.BlockSpec((Gt, 2, Emax), lambda g: (g, 0, 0))],
        out_specs=pl.BlockSpec((n, Gt * n), lambda g: (0, g)),   # lane-dense slab
        out_shape=jax.ShapeDtypeStruct((n, B_pad * n), jnp.float32),
        compiler_params=pltpu.CompilerParams(
            dimension_semantics=("parallel",),
            vmem_limit_bytes=32 * 1024 * 1024,
        ),
    )(edges_padded)

    # (n, B_pad*n) -> (B, n, n): wrapper-side layout plumbing only.
    L = L_flat.reshape(n, B_pad, n).transpose(1, 0, 2)
    return L[:B]


def calc_lap(batch_np, edge_index_np, natoms_np, lap_dim):
    """BaseModel.calc_lap / lap_eigvec.  Laplacian assembly runs in Pallas;
    eigh runs in plain JAX.  (Relies on edge_index containing both edge
    directions, as radius_graph produces, so L is symmetric.)"""
    natoms_np = np.asarray(natoms_np)
    B = len(natoms_np)
    n = int(natoms_np[0])
    assert np.all(natoms_np == n), "demo assumes equal natoms per graph"
    # TODO(synk): variable natoms per graph needs padded/masked eigh; not implemented.

    edges_padded, _ = group_edges_per_graph(batch_np, edge_index_np, natoms_np)
    L = build_normalized_laplacian(edges_padded, n)

    # TODO(synk): torch.linalg.eigh has no Pallas equivalent; use jnp.linalg.eigh.
    _, eigvec = jnp.linalg.eigh(L)                         # (B, n, n)

    if n <= lap_dim:
        ev = jnp.pad(eigvec, ((0, 0), (0, 0), (0, lap_dim - n)))
    else:
        ev = eigvec[:, :, :lap_dim]
    return ev.reshape(B * n, lap_dim)


# ----------------------------------------------------------------------------
if __name__ == "__main__":
    key = jax.random.PRNGKey(0)
    B = 2           # graphs
    n_per = 8       # atoms per graph
    N = B * n_per
    lap_dim = 16
    cutoff = 3.0

    pos = jax.random.normal(key, (N, 3), jnp.float32)
    batch_np = np.repeat(np.arange(B), n_per).astype(np.int32)
    natoms_np = np.full((B,), n_per, np.int32)

    # host glue (stands in for radius_graph OTF construction): all ordered pairs
    # within the same graph closer than `cutoff`
    pos_np = np.asarray(pos)
    js, is_ = [], []
    for a in range(N):
        for b in range(N):
            if a != b and batch_np[a] == batch_np[b]:
                if np.linalg.norm(pos_np[a] - pos_np[b]) < cutoff:
                    js.append(a)   # j = source / neighbor
                    is_.append(b)  # i = target / center
    edge_index_np = np.stack([np.array(js, np.int32), np.array(is_, np.int32)])
    edge_index = jnp.asarray(edge_index_np)
    batch = jnp.asarray(batch_np)

    # --- generate_graph (non-PBC) via Pallas ---
    (ei, edge_dist, distance_vec, cell_offsets,
     cell_offset_distances, neighbors) = generate_graph(pos, edge_index, batch, B)
    jax.block_until_ready((edge_dist, distance_vec, neighbors))

    # sanity vs. plain numpy reference (bf16 hi/lo gather ~ f32 accurate)
    ref_dvec = pos_np[edge_index_np[0]] - pos_np[edge_index_np[1]]
    ref_dist = np.linalg.norm(ref_dvec, axis=-1)
    ref_nbr = np.bincount(batch_np[edge_index_np[1]], minlength=B)
    assert np.allclose(np.asarray(distance_vec), ref_dvec, atol=5e-4)
    assert np.allclose(np.asarray(edge_dist), ref_dist, atol=5e-4)
    assert np.array_equal(np.asarray(neighbors), ref_nbr)

    # --- Pallas normalized-Laplacian check vs numpy reference ---
    edges_padded, _ = group_edges_per_graph(batch_np, edge_index_np, natoms_np)
    L = build_normalized_laplacian(edges_padded, n_per)
    jax.block_until_ready(L)
    L_ref_np = np.zeros((B, n_per, n_per), np.float32)
    for g in range(B):
        off = g * n_per
        m = (batch_np[edge_index_np[0]] == g) & (batch_np[edge_index_np[1]] == g)
        A = np.zeros((n_per, n_per), np.float32)
        for s, d in zip(edge_index_np[0][m] - off, edge_index_np[1][m] - off):
            A[s, d] += 1.0
        deg = A.sum(1)
        ninv = 1.0 / np.sqrt(np.clip(deg, 1.0, None))
        L_ref_np[g] = np.eye(n_per, dtype=np.float32) - A * ninv[:, None] * ninv[None, :]
    assert np.allclose(np.asarray(L), L_ref_np, atol=1e-5)

    # --- calc_lap via Pallas (Laplacian) + jnp eigh ---
    lap_vec = calc_lap(batch_np, edge_index_np, natoms_np, lap_dim)
    jax.block_until_ready(lap_vec)
    assert lap_vec.shape == (N, lap_dim)
    assert bool(jnp.all(jnp.isfinite(lap_vec)))

    print("KERNEL_OK")
</pallas_src>

<mosaic_0001>
module attributes {stable_mosaic.version = 11 : i64} {
  func.func @_edge_geometry_kernel(%arg0: i32, %arg1: memref<1xi32, #tpu.memory_space<smem>>, %arg2: memref<2x128xi32, #tpu.memory_space<vmem>>, %arg3: memref<8x128xbf16, #tpu.memory_space<vmem>>, %arg4: memref<8x128xbf16, #tpu.memory_space<vmem>>, %arg5: memref<8x128xf32, #tpu.memory_space<vmem>>) attributes {dimension_semantics = [#tpu.dimension_semantics<parallel>], iteration_bounds = array<i64: 1>, scalar_prefetch = 1 : i64, scratch_operands = 0 : i64, tpu.core_type = #tpu.core_type<tc>, window_params = [{transform_indices = @transform_0, window_bounds = array<i64: 2, 128>}, {transform_indices = @transform_1, window_bounds = array<i64: 8, 128>}, {transform_indices = @transform_2, window_bounds = array<i64: 8, 128>}, {transform_indices = @transform_3, window_bounds = array<i64: 8, 128>}]} {
    %c0 = arith.constant 0 : index
    %c0_0 = arith.constant 0 : index
    %0 = vector.load %arg2[%c0, %c0_0] : memref<2x128xi32, #tpu.memory_space<vmem>>, vector<2x128xi32>
    %1 = vector.extract_strided_slice %0 {offsets = [0, 0], sizes = [1, 128], strides = [1, 1]} : vector<2x128xi32> to vector<1x128xi32>
    %2 = vector.extract_strided_slice %0 {offsets = [1, 0], sizes = [1, 128], strides = [1, 1]} : vector<2x128xi32> to vector<1x128xi32>
    %3 = tpu.iota {dimensions = array<i32: 0>} : vector<128x128xi32>
    %4 = vector.broadcast %1 : vector<1x128xi32> to vector<128x128xi32>
    %5 = arith.cmpi eq, %3, %4 : vector<128x128xi32>
    %6 = arith.extui %5 : vector<128x128xi1> to vector<128x128xi32>
    %7 = arith.sitofp %6 : vector<128x128xi32> to vector<128x128xf32>
    %8 = arith.truncf %7 : vector<128x128xf32> to vector<128x128xbf16>
    %9 = vector.broadcast %2 : vector<1x128xi32> to vector<128x128xi32>
    %10 = arith.cmpi eq, %3, %9 : vector<128x128xi32>
    %11 = arith.extui %10 : vector<128x128xi1> to vector<128x128xi32>
    %12 = arith.sitofp %11 : vector<128x128xi32> to vector<128x128xf32>
    %13 = arith.truncf %12 : vector<128x128xf32> to vector<128x128xbf16>
    %14 = arith.subf %8, %13 : vector<128x128xbf16>
    %c0_1 = arith.constant 0 : index
    %c0_2 = arith.constant 0 : index
    %15 = vector.load %arg3[%c0_1, %c0_2] : memref<8x128xbf16, #tpu.memory_space<vmem>>, vector<8x128xbf16>
    %cst = arith.constant dense<0.000000e+00> : vector<8x128xf32>
    %16 = tpu.matmul %15, %14, %cst {dimension_numbers = #tpu.dot_dimension_numbers<[1], [0], [0], [1], [0, 0, 1, 1], [], []>} : vector<8x128xbf16>, vector<128x128xbf16>, vector<8x128xf32> -> vector<8x128xf32>
    %c0_3 = arith.constant 0 : index
    %c0_4 = arith.constant 0 : index
    %17 = vector.load %arg4[%c0_3, %c0_4] : memref<8x128xbf16, #tpu.memory_space<vmem>>, vector<8x128xbf16>
    %cst_5 = arith.constant dense<0.000000e+00> : vector<8x128xf32>
    %18 = tpu.matmul %17, %14, %cst_5 {dimension_numbers = #tpu.dot_dimension_numbers<[1], [0], [0], [1], [0, 0, 1, 1], [], []>} : vector<8x128xbf16>, vector<128x128xbf16>, vector<8x128xf32> -> vector<8x128xf32>
    %19 = arith.addf %16, %18 : vector<8x128xf32>
    %20 = vector.extract_strided_slice %19 {offsets = [0, 0], sizes = [1, 128], strides = [1, 1]} : vector<8x128xf32> to vector<1x128xf32>
    %21 = vector.extract_strided_slice %19 {offsets = [1, 0], sizes = [1, 128], strides = [1, 1]} : vector<8x128xf32> to vector<1x128xf32>
    %22 = vector.extract_strided_slice %19 {offsets = [2, 0], sizes = [1, 128], strides = [1, 1]} : vector<8x128xf32> to vector<1x128xf32>
    %23 = arith.mulf %20, %20 : vector<1x128xf32>
    %24 = arith.mulf %21, %21 : vector<1x128xf32>
    %25 = arith.addf %23, %24 : vector<1x128xf32>
    %26 = arith.mulf %22, %22 : vector<1x128xf32>
    %27 = arith.addf %25, %26 : vector<1x128xf32>
    %28 = math.sqrt %27 : vector<1x128xf32>
    %c0_6 = arith.constant 0 : index
    %c0_7 = arith.constant 0 : index
    %29 = vector.load %arg5[%c0_6, %c0_7] : memref<8x128xf32, #tpu.memory_space<vmem>>, vector<8x128xf32>
    tpu.vector_store %arg5[%c0_6, %c0_7], %19 {strides = array<i32>} : memref<8x128xf32, #tpu.memory_space<vmem>>, vector<8x128xf32>,
    %c3 = arith.constant 3 : index
    %c0_8 = arith.constant 0 : index
    %30 = vector.load %arg5[%c3, %c0_8] : memref<8x128xf32, #tpu.memory_space<vmem>>, vector<1x128xf32>
    tpu.vector_store %arg5[%c3, %c0_8], %28 {strides = array<i32>} : memref<8x128xf32, #tpu.memory_space<vmem>>, vector<1x128xf32>,
    return
  }
  func.func @transform_0(%arg0: i32, %arg1: memref<1xi32, #tpu.memory_space<smem>>) -> (i32, i32) {
    %c0_i32 = arith.constant 0 : i32
    %c0_i32_0 = arith.constant 0 : i32
    return %c0_i32, %arg0 : i32, i32
  }
  func.func @transform_1(%arg0: i32, %arg1: memref<1xi32, #tpu.memory_space<smem>>) -> (i32, i32) {
    %0 = arith.index_cast %arg0 : i32 to index
    %1 = memref.load %arg1[%0] : memref<1xi32, #tpu.memory_space<smem>>
    %c0_i32 = arith.constant 0 : i32
    %c0_i32_0 = arith.constant 0 : i32
    return %c0_i32, %1 : i32, i32
  }
  func.func @transform_2(%arg0: i32, %arg1: memref<1xi32, #tpu.memory_space<smem>>) -> (i32, i32) {
    %0 = arith.index_cast %arg0 : i32 to index
    %1 = memref.load %arg1[%0] : memref<1xi32, #tpu.memory_space<smem>>
    %c0_i32 = arith.constant 0 : i32
    %c0_i32_0 = arith.constant 0 : i32
    return %c0_i32, %1 : i32, i32
  }
  func.func @transform_3(%arg0: i32, %arg1: memref<1xi32, #tpu.memory_space<smem>>) -> (i32, i32) {
    %c0_i32 = arith.constant 0 : i32
    %c0_i32_0 = arith.constant 0 : i32
    return %c0_i32, %arg0 : i32, i32
  }
}

</mosaic_0001>

<llo_original>
// kernel: tpu_custom_call.1
$region0: #{tpu_custom_call.1}
  #allocation0 [shape = 'u32[]', space=smem, size = 0x4, offset = 0x4, fixed_abs, tag = 'smem constant byte address 0x4 - core index']
  #allocation1 [shape = 'u32[144,128]{1,0:T(1,128)}', space=vmem, size = 0x12000, scoped, tag = 'internal scratch']
  #allocation2 [shape = 's32[1]{0}', space=sflag, size = 0x4, scoped, tag = 'scoped memory for tpu_custom_call.1']
  #allocation3 [shape = 's32[1]{0:T(128)S(6)}', space=smem, size = 0x200, scoped, tag = 'prefetched SMEM operand 0']
  %s0 = inlined_call_operand.<no memory space> [shape: s32[1], index: 0, kind: input, shape index: {}]
  %s1 = inlined_call_operand.hbm [shape: s32[2,128], index: 1, kind: input, shape index: {}]
  %s2 = inlined_call_operand.hbm [shape: bf16[8,128], index: 2, kind: input, shape index: {}]
  %s3 = inlined_call_operand.vmem [shape: bf16[8,128], index: 3, kind: input, shape index: {}]
  %s4 = inlined_call_operand.hbm [shape: f32[8,128], index: 4, kind: output, shape index: {}]
  %s5 = sld [smem:[#allocation0]]
  $region30: #{tpu_custom_call.1} parent=0
    _
  %s7 = ssub.s32 1, %s5
  %s8 = scalar_select 0, %s7, %s5
  %9 = sst [smem:[#allocation3]] %s0
  $region1: #{tpu_custom_call.1} parent=0
    #allocation4 [shape = 'u8[1024]{0}', space=vmem, size = 0x400, scoped, tag = 'input window, operand 1, single buffered']
    #allocation5 [shape = 's32[1]{0}', space=sflag, size = 0x4, scoped, tag = 'scoped memory for tpu_custom_call.1']
    #allocation6 [shape = 's32[1]{0}', space=sflag, size = 0x4, scoped, tag = 'scoped memory for tpu_custom_call.1']
    #allocation7 [shape = 'u8[2048]{0}', space=vmem, size = 0x800, scoped, tag = 'input window, operand 2, single buffered']
    #allocation8 [shape = 's32[1]{0}', space=sflag, size = 0x4, scoped, tag = 'scoped memory for tpu_custom_call.1']
    #allocation9 [shape = 'u8[4096]{0}', space=vmem, size = 0x1000, scoped, tag = 'output window, operand 0, single buffered']
    %10 = vsyncpa [#allocation5], 0
    %11 = vsyncpa [#allocation8], 0
    %12 = vsyncpa [#allocation6], 0
    // Predicated region
    $region2: #{tpu_custom_call.1} parent=1 // pred_check
      _
    $region3: #{tpu_custom_call.1} parent=1 // pred_check_branch
      %14 = sbr.rel (0) target = $region5
    $region4: #{tpu_custom_call.1} parent=1 // pred_region
      %s16 = ssub.s32 32, 32
      %17 = vsyncadd [#allocation5], %s16
      %s19 = sshll.u32 [#allocation4], 4
      %s20 = int_to_ptr.vmem [resolvable:$true] %s19
      %22 = dma.hbm_to_vmem [thread:$0]  %s1, 32, %s20, [#allocation5]
    $region5: #{tpu_custom_call.1} parent=1 // pred_fallthru
      _
    // Predicated region
    $region6: #{tpu_custom_call.1} parent=1 // pred_check
      _
    $region7: #{tpu_custom_call.1} parent=1 // pred_check_branch
      %24 = sbr.rel (0) target = $region9
    $region8: #{tpu_custom_call.1} parent=1 // pred_region
      %s25 = sld [smem:[#allocation3]]
      %s27 = ssub.s32 64, 64
      %28 = vsyncadd [#allocation8], %s27
      %s29 = smul.addr %s25, 64
      %s30 = scalar_lea.hbm %s2, %s29
      %s32 = sshll.u32 [#allocation7], 4
      %s33 = int_to_ptr.vmem [resolvable:$true] %s32
      %35 = dma.hbm_to_vmem [thread:$0]  %s30, 64, %s33, [#allocation8]
    $region9: #{tpu_custom_call.1} parent=1 // pred_fallthru
      _
    // Predicated region
    $region10: #{tpu_custom_call.1} parent=1 // pred_check
      _
    $region11: #{tpu_custom_call.1} parent=1 // pred_check_branch
      %37 = sbr.rel (0) target = $region13
    $region12: #{tpu_custom_call.1} parent=1 // pred_region
      %s38 = sld [smem:[#allocation3]]
      %p39 = scmp.lt.s32.totalorder %s38, 0
      %s40 = scalar_select %p39, %s38, 0
      %s41 = smul.addr %s40, 4
      %s42 = scalar_lea.vmem %s3, %s41
      %s43 = sld [smem:[#allocation3]]
    $region13: #{tpu_custom_call.1} parent=1 // pred_fallthru
      _
    // Predicated region
    $region14: #{tpu_custom_call.1} parent=1 // pred_check
      _
    $region15: #{tpu_custom_call.1} parent=1 // pred_check_branch
      %45 = sbr.rel (0) target = $region17
    $region16: #{tpu_custom_call.1} parent=1 // pred_region
      %46 = dma.done [#allocation5], 32
    $region17: #{tpu_custom_call.1} parent=1 // pred_fallthru
      _
    // Predicated region
    $region18: #{tpu_custom_call.1} parent=1 // pred_check
      _
    $region19: #{tpu_custom_call.1} parent=1 // pred_check_branch
      %48 = sbr.rel (0) target = $region21
    $region20: #{tpu_custom_call.1} parent=1 // pred_region
      %49 = dma.done [#allocation8], 64
    $region21: #{tpu_custom_call.1} parent=1 // pred_fallthru
      _
    %s50 = sld [smem:[#allocation3]]
    %p51 = scmp.lt.s32.totalorder %s50, 0
    %s52 = scalar_select %p51, %s50, 0
    %s53 = smul.addr %s52, 4
    %s54 = scalar_lea.vmem %s3, %s53
    %s55 = sld [smem:[#allocation3]]
    %s56 = sld [smem:[#allocation3]]
    %p57 = scmp.lt.s32.totalorder %s56, 0
    %s58 = scalar_select %p57, %s56, 0
    %s59 = smul.addr %s58, 4
    %s60 = scalar_lea.vmem %s3, %s59
    %s61 = sld [smem:[#allocation3]]
    %v63 = vld [vmem:[#allocation4] sm:$0x3]
    %v64 = vlaneseq
    %v65 = vshrl.u32 %v64, 7
    %v66 = vadd.s32 %v65, 8
    %v67 = vadd.s32 %v65, 16
    %v68 = vadd.s32 %v65, 24
    %v69 = vadd.s32 %v65, 32
    %v70 = vadd.s32 %v65, 40
    %v71 = vadd.s32 %v65, 48
    %v72 = vadd.s32 %v65, 56
    %v73 = vadd.s32 %v65, 64
    %v74 = vadd.s32 %v65, 72
    %v75 = vadd.s32 %v65, 80
    %v76 = vadd.s32 %v65, 88
    %v77 = vadd.s32 %v65, 96
    %v78 = vadd.s32 %v65, 104
    %v79 = vadd.s32 %v65, 112
    %v80 = vadd.s32 %v65, 120
    %v81 = vlaneseq
    %v82 = vshrl.u32 %v81, 7
    %v83 = vsub.s32 0, %v82
    %v84 = vrot.slane %v63, %v83
    %vm85 = vcmp.eq.s32.totalorder %v65, %v84
    %vm86 = vcmp.eq.s32.totalorder %v66, %v84
    %vm87 = vcmp.eq.s32.totalorder %v67, %v84
    %vm88 = vcmp.eq.s32.totalorder %v68, %v84
    %vm89 = vcmp.eq.s32.totalorder %v69, %v84
    %vm90 = vcmp.eq.s32.totalorder %v70, %v84
    %vm91 = vcmp.eq.s32.totalorder %v71, %v84
    %vm92 = vcmp.eq.s32.totalorder %v72, %v84
    %vm93 = vcmp.eq.s32.totalorder %v73, %v84
    %vm94 = vcmp.eq.s32.totalorder %v74, %v84
    %vm95 = vcmp.eq.s32.totalorder %v75, %v84
    %vm96 = vcmp.eq.s32.totalorder %v76, %v84
    %vm97 = vcmp.eq.s32.totalorder %v77, %v84
    %vm98 = vcmp.eq.s32.totalorder %v78, %v84
    %vm99 = vcmp.eq.s32.totalorder %v79, %v84
    %vm100 = vcmp.eq.s32.totalorder %v80, %v84
    %v101 = vsel %vm85, 1, 0
    %v102 = vsel %vm86, 1, 0
    %v103 = vsel %vm87, 1, 0
    %v104 = vsel %vm88, 1, 0
    %v105 = vsel %vm89, 1, 0
    %v106 = vsel %vm90, 1, 0
    %v107 = vsel %vm91, 1, 0
    %v108 = vsel %vm92, 1, 0
    %v109 = vsel %vm93, 1, 0
    %v110 = vsel %vm94, 1, 0
    %v111 = vsel %vm95, 1, 0
    %v112 = vsel %vm96, 1, 0
    %v113 = vsel %vm97, 1, 0
    %v114 = vsel %vm98, 1, 0
    %v115 = vsel %vm99, 1, 0
    %v116 = vsel %vm100, 1, 0
    %v117 = vcvt.s32.f32 %v101
    %v118 = vcvt.s32.f32 %v102
    %v119 = vcvt.s32.f32 %v103
    %v120 = vcvt.s32.f32 %v104
    %v121 = vcvt.s32.f32 %v105
    %v122 = vcvt.s32.f32 %v106
    %v123 = vcvt.s32.f32 %v107
    %v124 = vcvt.s32.f32 %v108
    %v125 = vcvt.s32.f32 %v109
    %v126 = vcvt.s32.f32 %v110
    %v127 = vcvt.s32.f32 %v111
    %v128 = vcvt.s32.f32 %v112
    %v129 = vcvt.s32.f32 %v113
    %v130 = vcvt.s32.f32 %v114
    %v131 = vcvt.s32.f32 %v115
    %v132 = vcvt.s32.f32 %v116
    %v133 = vpack.c.bf16 %v118, %v117
    %v134 = vpack.c.bf16 %v120, %v119
    %v135 = vpack.c.bf16 %v122, %v121
    %v136 = vpack.c.bf16 %v124, %v123
    %v137 = vpack.c.bf16 %v126, %v125
    %v138 = vpack.c.bf16 %v128, %v127
    %v139 = vpack.c.bf16 %v130, %v129
    %v140 = vpack.c.bf16 %v132, %v131
    %v141 = vlaneseq
    %v142 = vshrl.u32 %v141, 7
    %v143 = vsub.s32 1, %v142
    %v144 = vrot.slane %v63, %v143
    %vm145 = vcmp.eq.s32.totalorder %v65, %v144
    %vm146 = vcmp.eq.s32.totalorder %v66, %v144
    %vm147 = vcmp.eq.s32.totalorder %v67, %v144
    %vm148 = vcmp.eq.s32.totalorder %v68, %v144
    %vm149 = vcmp.eq.s32.totalorder %v69, %v144
    %vm150 = vcmp.eq.s32.totalorder %v70, %v144
    %vm151 = vcmp.eq.s32.totalorder %v71, %v144
    %vm152 = vcmp.eq.s32.totalorder %v72, %v144
    %vm153 = vcmp.eq.s32.totalorder %v73, %v144
    %vm154 = vcmp.eq.s32.totalorder %v74, %v144
    %vm155 = vcmp.eq.s32.totalorder %v75, %v144
    %vm156 = vcmp.eq.s32.totalorder %v76, %v144
    %vm157 = vcmp.eq.s32.totalorder %v77, %v144
    %vm158 = vcmp.eq.s32.totalorder %v78, %v144
    %vm159 = vcmp.eq.s32.totalorder %v79, %v144
    %vm160 = vcmp.eq.s32.totalorder %v80, %v144
    %v161 = vsel %vm145, 1, 0
    %v162 = vsel %vm146, 1, 0
    %v163 = vsel %vm147, 1, 0
    %v164 = vsel %vm148, 1, 0
    %v165 = vsel %vm149, 1, 0
    %v166 = vsel %vm150, 1, 0
    %v167 = vsel %vm151, 1, 0
    %v168 = vsel %vm152, 1, 0
    %v169 = vsel %vm153, 1, 0
    %v170 = vsel %vm154, 1, 0
    %v171 = vsel %vm155, 1, 0
    %v172 = vsel %vm156, 1, 0
    %v173 = vsel %vm157, 1, 0
    %v174 = vsel %vm158, 1, 0
    %v175 = vsel %vm159, 1, 0
    %v176 = vsel %vm160, 1, 0
    %v177 = vcvt.s32.f32 %v161
    %v178 = vcvt.s32.f32 %v162
    %v179 = vcvt.s32.f32 %v163
    %v180 = vcvt.s32.f32 %v164
    %v181 = vcvt.s32.f32 %v165
    %v182 = vcvt.s32.f32 %v166
    %v183 = vcvt.s32.f32 %v167
    %v184 = vcvt.s32.f32 %v168
    %v185 = vcvt.s32.f32 %v169
    %v186 = vcvt.s32.f32 %v170
    %v187 = vcvt.s32.f32 %v171
    %v188 = vcvt.s32.f32 %v172
    %v189 = vcvt.s32.f32 %v173
    %v190 = vcvt.s32.f32 %v174
    %v191 = vcvt.s32.f32 %v175
    %v192 = vcvt.s32.f32 %v176
    %v193 = vpack.c.bf16 %v178, %v177
    %v194 = vpack.c.bf16 %v180, %v179
    %v195 = vpack.c.bf16 %v182, %v181
    %v196 = vpack.c.bf16 %v184, %v183
    %v197 = vpack.c.bf16 %v186, %v185
    %v198 = vpack.c.bf16 %v188, %v187
    %v199 = vpack.c.bf16 %v190, %v189
    %v200 = vpack.c.bf16 %v192, %v191
    %v201 = vsub.bf16 %v133, %v193
    %v202 = vsub.bf16 %v134, %v194
    %v203 = vsub.bf16 %v135, %v195
    %v204 = vsub.bf16 %v136, %v196
    %v205 = vsub.bf16 %v137, %v197
    %v206 = vsub.bf16 %v138, %v198
    %v207 = vsub.bf16 %v139, %v199
    %v208 = vsub.bf16 %v140, %v200
    %v209 = vld [vmem:[#allocation7] sm:$0xf]
    %v210 = vld [vmem:[%s60] sm:$0xf]
    %211 = vmatprep.subr.bf16.mxu0 0
    %212 = vmatpush1.bf16.msra.mxu0 %v208
    %213 = vmatprep.subr.bf16.mxu0 0
    %214 = vmatpush1.bf16.msra.mxu0 %v207
    %215 = vmatprep.subr.bf16.mxu0 0
    %216 = vmatpush1.bf16.msra.mxu0 %v206
    %217 = vmatprep.subr.bf16.mxu0 0
    %218 = vmatpush1.bf16.msra.mxu0 %v205
    %219 = vmatprep.subr.bf16.mxu0 0
    %220 = vmatpush1.bf16.msra.mxu0 %v204
    %221 = vmatprep.subr.bf16.mxu0 0
    %222 = vmatpush1.bf16.msra.mxu0 %v203
    %223 = vmatprep.subr.bf16.mxu0 0
    %224 = vmatpush1.bf16.msra.mxu0 %v202
    %225 = vmatprep.subr.bf16.mxu0 0
    %226 = vmatpush1.bf16.msra.mxu0 %v201
    %227 = vmatprep.subr.bf16.mxu0 0
    %228 = vmatpush2.bf16.msra.mxu0 0
    %229 = vmatprep.subr.bf16.mxu0 0
    %230 = vmatpush2.bf16.msra.mxu0 0
    %231 = vmatprep.subr.bf16.mxu0 0
    %232 = vmatpush2.bf16.msra.mxu0 0
    %233 = vmatprep.subr.bf16.mxu0 0
    %234 = vmatpush2.bf16.msra.mxu0 0
    %235 = vmatprep.subr.bf16.mxu0 0
    %236 = vmatpush2.bf16.msra.mxu0 0
    %237 = vmatprep.subr.bf16.mxu0 0
    %238 = vmatpush2.bf16.msra.mxu0 0
    %239 = vmatprep.subr.bf16.mxu0 0
    %240 = vmatpush2.bf16.msra.mxu0 0
    %241 = vmatprep.subr.bf16.mxu0 0
    %242 = vmatpush2.bf16.msra.mxu0 0
    %243 = vmatprep.mubr.bf16.mxu0 0
    %244 = vmatmul.mubr.bf16.gmra.mxu0 %v210
    %v245 = vpop.f32.mrf.mxu0
    %v246 = vadd.f32 0.0, %v245
    %v247 = vpop.f32.mrf.mxu0
    %v248 = vpop.f32.mrf.mxu0
    %v249 = vpop.f32.mrf.mxu0
    %250 = vdwg.mxu0
    %251 = vmatprep.subr.bf16.mxu0 0
    %252 = vmatpush1.bf16.msra.mxu0 %v208
    %253 = vmatprep.subr.bf16.mxu0 0
    %254 = vmatpush1.bf16.msra.mxu0 %v207
    %255 = vmatprep.subr.bf16.mxu0 0
    %256 = vmatpush1.bf16.msra.mxu0 %v206
    %257 = vmatprep.subr.bf16.mxu0 0
    %258 = vmatpush1.bf16.msra.mxu0 %v205
    %259 = vmatprep.subr.bf16.mxu0 0
    %260 = vmatpush1.bf16.msra.mxu0 %v204
    %261 = vmatprep.subr.bf16.mxu0 0
    %262 = vmatpush1.bf16.msra.mxu0 %v203
    %263 = vmatprep.subr.bf16.mxu0 0
    %264 = vmatpush1.bf16.msra.mxu0 %v202
    %265 = vmatprep.subr.bf16.mxu0 0
    %266 = vmatpush1.bf16.msra.mxu0 %v201
    %267 = vmatprep.subr.bf16.mxu0 0
    %268 = vmatpush2.bf16.msra.mxu0 0
    %269 = vmatprep.subr.bf16.mxu0 0
    %270 = vmatpush2.bf16.msra.mxu0 0
    %271 = vmatprep.subr.bf16.mxu0 0
    %272 = vmatpush2.bf16.msra.mxu0 0
    %273 = vmatprep.subr.bf16.mxu0 0
    %274 = vmatpush2.bf16.msra.mxu0 0
    %275 = vmatprep.subr.bf16.mxu0 0
    %276 = vmatpush2.bf16.msra.mxu0 0
    %277 = vmatprep.subr.bf16.mxu0 0
    %278 = vmatpush2.bf16.msra.mxu0 0
    %279 = vmatprep.subr.bf16.mxu0 0
    %280 = vmatpush2.bf16.msra.mxu0 0
    %281 = vmatprep.subr.bf16.mxu0 0
    %282 = vmatpush2.bf16.msra.mxu0 0
    %283 = vmatprep.mubr.bf16.mxu0 0
    %284 = vmatmul.mubr.bf16.gmra.mxu0 %v209
    %v285 = vpop.f32.mrf.mxu0
    %v286 = vadd.f32 %v246, %v285
    %v287 = vpop.f32.mrf.mxu0
    %v288 = vpop.f32.mrf.mxu0
    %v289 = vpop.f32.mrf.mxu0
    %290 = vdwg.mxu0
    %v291 = vmul.f32 %v286, %v286
    %v293 = vrot.slane %v291, 1
    %v295 = vadd.f32 %v291, %v293
    %v296 = vrot.slane %v291, 2
    %v298 = vadd.f32 %v295, %v296
    %v299 = vrsqrt.pop %v298
    %v300 = vmul.f32 %v298, %v299
    %vm301 = vcmp.eq.f32.partialorder %v298, inf
    %v302 = vsel %vm301, %v298, %v300
    %vm303 = vcmp.eq.f32.partialorder %v298, 0.0
    %v304 = vand.u32 %v298, 2147483648
    %v305 = vsel %vm303, %v304, %v302
    %306 = vst [vmem:[#allocation9] sm:$0xff] %v286
    %307 = vst [vmem:[#allocation9 + $0x3] sm:$0x1] %v305
    // Predicated region
    $region22: #{tpu_custom_call.1} parent=1 // pred_check
      _
    $region23: #{tpu_custom_call.1} parent=1 // pred_check_branch
      %309 = sbr.rel (0) target = $region25
    $region24: #{tpu_custom_call.1} parent=1 // pred_region
      %s311 = ssub.s32 128, 128
      %312 = vsyncadd [#allocation6], %s311
      %s314 = sshll.u32 [#allocation9], 4
      %s315 = int_to_ptr.vmem [resolvable:$true] %s314
      %317 = dma.vmem_to_hbm [thread:$0]  %s315, 128, %s4, [#allocation6]
    $region25: #{tpu_custom_call.1} parent=1 // pred_fallthru
      _
    // Predicated region
    $region26: #{tpu_custom_call.1} parent=1 // pred_check
      _
    $region27: #{tpu_custom_call.1} parent=1 // pred_check_branch
      %319 = sbr.rel (0) target = $region29
    $region28: #{tpu_custom_call.1} parent=1 // pred_region
      %320 = dma.done [#allocation6], 128
    $region29: #{tpu_custom_call.1} parent=1 // pred_fallthru
      _
    %321 = vsyncpa [#allocation5], 1
    %322 = vsyncpa [#allocation8], 1
    %323 = vsyncpa [#allocation6], 1

</llo_original>
